<compile_context>
chip_gen: v5e
topology: v5e:2x2
jax: 0.10.0
libtpu: 0.0.40
codegen_flags: <defaults>
</compile_context>

<pallas_src>
import jax
import jax.numpy as jnp
from jax.experimental import pallas as pl
from jax.experimental.pallas import tpu as pltpu

BN_EPS = 1e-5


# --------------------------------------------------------------------------
# Fused kernel, grid = (row tiles, K tiles):
#   acc_i  += (A+I)[i, k] @ (d_k^{-1/2} * x_k @ W_gcn)          (bf16 MXU, f32 acc)
#   epilogue (last K tile):
#     z = tanh(d_i^{-1/2} * acc_i + b_gcn)
#     g = sigmoid(z @ W_gate + b_gate)                           (bf16 MXU)
#     xl = x_i @ W_lin + b_lin
#     h = relu((1 - g) * xl + g * z)
#     o = h * bn_scale + bn_shift                                (folded BN, eval)
# --------------------------------------------------------------------------
def splice_gcn_kernel(x_row_ref, x_k_ref, a_ref, dinv_row_ref, dinv_k_ref,
                      w_gcn_ref, w_lin_ref, w_gate_ref, params_ref,
                      o_ref, acc_ref):
    k = pl.program_id(1)

    @pl.when(k == 0)
    def _():
        acc_ref[...] = jnp.zeros_like(acc_ref)

    # D^{-1/2} X W_gcn for this K tile (recomputed per row tile; ~2C/TM of the
    # aggregation FLOPs -> negligible, saves the HBM round trip).
    xwg = jnp.dot(x_k_ref[...], w_gcn_ref[...],
                  preferred_element_type=jnp.float32)
    xwg = (xwg * dinv_k_ref[...]).astype(jnp.bfloat16)          # [TK, Hp]

    a = a_ref[...].astype(jnp.bfloat16)                         # exact 0/1
    acc_ref[...] += jnp.dot(a, xwg, preferred_element_type=jnp.float32)

    @pl.when(k == pl.num_programs(1) - 1)
    def _():
        p = params_ref[...]                                     # [8, Hp]
        b_gcn, b_gate, b_lin = p[0:1, :], p[1:2, :], p[2:3, :]
        bn_scale, bn_shift = p[3:4, :], p[4:5, :]

        z = jnp.tanh(acc_ref[...] * dinv_row_ref[...] + b_gcn)
        g = jax.nn.sigmoid(
            jnp.dot(z.astype(jnp.bfloat16), w_gate_ref[...],
                    preferred_element_type=jnp.float32) + b_gate)
        xl = jnp.dot(x_row_ref[...], w_lin_ref[...],
                     preferred_element_type=jnp.float32) + b_lin
        h = jnp.maximum((1.0 - g) * xl + g * z, 0.0)
        # TODO(synk): training-mode dropout / batch-statistic BN not
        # implemented (eval mode: dropout is identity, BN uses running stats).
        o_ref[...] = h * bn_scale + bn_shift


# --------------------------------------------------------------------------
# Glue helpers
# --------------------------------------------------------------------------
def build_adjacency_int8(edge_index, n, npad):
    """0/1 (A + I) as int8 (padded), plus d^{-1/2} column vector (padded).

    Matches PyG gcn_norm semantics for simple unweighted graphs: self loops
    are set (not added) on the diagonal, so pre-existing self loops in
    edge_index do not double the diagonal.  Duplicate edges collapse to 1.
    """
    src, dst = edge_index[0], edge_index[1]
    a = jnp.zeros((npad, npad), jnp.int8).at[dst, src].set(1)
    idx = jnp.arange(n)
    a = a.at[idx, idx].set(1)
    deg = jnp.sum(a, axis=1, dtype=jnp.int32).astype(jnp.float32)
    dinv = jnp.where(deg > 0, jax.lax.rsqrt(deg), 0.0).reshape(npad, 1)
    return a, dinv.astype(jnp.float32)


def _vmem_capacity_bytes():
    try:
        return int(pltpu.get_tpu_info().vmem_capacity_bytes)
    except Exception:
        return 64 * 1024 * 1024  # conservative (v7x per-TC physical VMEM)


def _working_set_bytes(tm, tk, rep, hp):
    a = 2 * tm * tk * 1                       # int8 adjacency, double-buffered
    xk = 2 * tk * rep * 4
    xr = 2 * tm * rep * 4
    dv = 2 * (tm + tk) * 4
    w = 2 * (2 * rep * hp * 4 + hp * hp * 2 + 8 * hp * 4)
    acc = tm * hp * 4
    out = 2 * tm * hp * 4
    return a + xk + xr + dv + w + acc + out


def _pick_tiles(npad, rep, hp, budget):
    """Largest (TM, TK) dividing npad whose double-buffered blocks fit budget."""
    for tm in (1024, 512, 256, 128):
        if npad % tm:
            continue
        for tk in (2048, 1024, 512, 256, 128):
            if npad % tk:
                continue
            if _working_set_bytes(tm, tk, rep, hp) <= budget:
                return tm, tk
    return 128, 128


def splice_graph_forward(xs, edge_index, params):
    N, C, W = xs.shape
    REP = 2 * C
    H = params["w_gcn"].shape[1]
    Hp = pl.cdiv(H, 128) * 128                     # lane-dense feature dim
    Npad = pl.cdiv(N, 128) * 128                   # pad node count (no tiny tiles)

    cap = _vmem_capacity_bytes()
    TM, TK = _pick_tiles(Npad, REP, Hp, budget=cap // 3)
    # NOTE: on v7x the "parallel" row axis shards across the 2 TensorCores;
    # for large graphs Npad // TM should be >= 2 (true once Npad >= 2 * TM).
    vmem_limit = int(min(cap, max(4 * _working_set_bytes(TM, TK, REP, Hp),
                                  32 * 1024 * 1024)))

    # ---- node representation 'min-max': trivial O(N*C*W) reduce in XLA glue;
    # all matmuls and the O(N^2) aggregation run inside the Pallas kernel.
    x = jnp.concatenate([xs.min(axis=2), xs.max(axis=2)], axis=1)
    x = jnp.pad(x.astype(jnp.float32), ((0, Npad - N), (0, 0)))   # [Npad, 2C]

    a_i8, dinv = build_adjacency_int8(edge_index, N, Npad)

    # ---- one-time parameter padding / packing -----------------------------
    def padf(v):
        v = v.astype(jnp.float32)
        return jnp.pad(v, [(0, 0)] * (v.ndim - 1) + [(0, Hp - v.shape[-1])])

    w_gcn = padf(params["w_gcn"])                                  # [2C, Hp]
    w_lin = padf(params["w_lin"])                                  # [2C, Hp]
    w_gate = jnp.pad(params["w_gate"].astype(jnp.float32),
                     ((0, Hp - H), (0, Hp - H))).astype(jnp.bfloat16)

    bn_scale = params["bn_gamma"] * jax.lax.rsqrt(params["bn_var"] + BN_EPS)
    bn_shift = params["bn_beta"] - params["bn_mean"] * bn_scale
    zeros = jnp.zeros((Hp,), jnp.float32)
    packed = jnp.stack(
        [padf(params["b_gcn"]), padf(params["b_gate"]), padf(params["b_lin"]),
         padf(bn_scale), padf(bn_shift), zeros, zeros, zeros], axis=0)  # [8, Hp]

    grid = (Npad // TM, Npad // TK)
    out = pl.pallas_call(
        splice_gcn_kernel,
        grid=grid,
        in_specs=[
            pl.BlockSpec((TM, REP), lambda i, k: (i, 0)),   # x rows (epilogue)
            pl.BlockSpec((TK, REP), lambda i, k: (k, 0)),   # x K tile (recompute)
            pl.BlockSpec((TM, TK), lambda i, k: (i, k)),    # (A+I) int8 block
            pl.BlockSpec((TM, 1), lambda i, k: (i, 0)),     # d^{-1/2} rows
            pl.BlockSpec((TK, 1), lambda i, k: (k, 0)),     # d^{-1/2} K tile
            pl.BlockSpec((REP, Hp), lambda i, k: (0, 0)),   # W_gcn (padded)
            pl.BlockSpec((REP, Hp), lambda i, k: (0, 0)),   # W_lin (padded)
            pl.BlockSpec((Hp, Hp), lambda i, k: (0, 0)),    # W_gate (bf16)
            pl.BlockSpec((8, Hp), lambda i, k: (0, 0)),     # packed small params
        ],
        out_specs=pl.BlockSpec((TM, Hp), lambda i, k: (i, 0)),
        out_shape=jax.ShapeDtypeStruct((Npad, Hp), jnp.float32),
        scratch_shapes=[pltpu.VMEM((TM, Hp), jnp.float32)],
        compiler_params=pltpu.CompilerParams(
            dimension_semantics=("parallel", "arbitrary"),
            vmem_limit_bytes=vmem_limit),
    )(x, x, a_i8, dinv, dinv, w_gcn, w_lin, w_gate, packed)

    return out[:N, :H]


# --------------------------------------------------------------------------
# Pure-JAX f32 reference mirroring the torch forward (eval mode)
# --------------------------------------------------------------------------
def reference_forward(xs, edge_index, params):
    N = xs.shape[0]
    x = jnp.concatenate([xs.min(axis=2), xs.max(axis=2)], axis=1)
    src, dst = edge_index[0], edge_index[1]
    a = jnp.zeros((N, N), jnp.float32).at[dst, src].set(1.0)
    idx = jnp.arange(N)
    a = a.at[idx, idx].set(1.0)
    deg = a.sum(axis=1)
    dinv = jnp.where(deg > 0, jax.lax.rsqrt(deg), 0.0)
    a_hat = dinv[:, None] * a * dinv[None, :]
    z = jnp.tanh(a_hat @ (x @ params["w_gcn"]) + params["b_gcn"])
    g = jax.nn.sigmoid(z @ params["w_gate"] + params["b_gate"])
    xl = x @ params["w_lin"] + params["b_lin"]
    h = jnp.maximum((1.0 - g) * xl + g * z, 0.0)
    return ((h - params["bn_mean"]) * jax.lax.rsqrt(params["bn_var"] + BN_EPS)
            * params["bn_gamma"] + params["bn_beta"])


if __name__ == "__main__":
    # Small, forward-consistent shapes:
    #   N nodes = 8, n_channels = 4, window = 16, hidden_size = 32
    #   node_representation 'min-max' -> rep_size = 8
    N, C, W, H = 8, 4, 16, 32
    REP = 2 * C

    key = jax.random.PRNGKey(0)
    keys = jax.random.split(key, 8)

    xs = jax.random.normal(keys[0], (N, C, W), jnp.float32)

    # simple undirected ring graph, edge_index shape [2, 2N]
    src = jnp.arange(N, dtype=jnp.int32)
    dst = (src + 1) % N
    edge_index = jnp.stack(
        [jnp.concatenate([src, dst]), jnp.concatenate([dst, src])], axis=0)

    params = {
        "w_gcn":  0.1 * jax.random.normal(keys[1], (REP, H), jnp.float32),
        "b_gcn":  0.1 * jax.random.normal(keys[2], (H,), jnp.float32),
        "w_gate": 0.1 * jax.random.normal(keys[3], (H, H), jnp.float32),
        "b_gate": 0.1 * jax.random.normal(keys[4], (H,), jnp.float32),
        "w_lin":  0.1 * jax.random.normal(keys[5], (REP, H), jnp.float32),
        "b_lin":  0.1 * jax.random.normal(keys[6], (H,), jnp.float32),
        # freshly-initialized BatchNorm (eval): gamma=1, beta=0, mean=0, var=1
        "bn_gamma": jnp.ones((H,), jnp.float32),
        "bn_beta":  jnp.zeros((H,), jnp.float32),
        "bn_mean":  jnp.zeros((H,), jnp.float32),
        "bn_var":   jnp.ones((H,), jnp.float32),
    }

    out = splice_graph_forward(xs, edge_index, params)
    out = jax.block_until_ready(out)

    ref = reference_forward(xs, edge_index, params)
    assert out.shape == (N, H) and out.dtype == jnp.float32
    # Adjacency is now exact (int8 0/1 + f32 degree scaling); remaining error
    # is only the bf16 carry of X@W_gcn / z / W_gate into the MXU.
    assert jnp.allclose(out, ref, rtol=2e-2, atol=2e-2), \
        "Pallas kernel mismatch vs reference"

    print("KERNEL_OK")
</pallas_src>

<mosaic_0001>
module attributes {stable_mosaic.version = 11 : i64} {
  func.func @splice_gcn_kernel(%arg0: i32, %arg1: i32, %arg2: memref<128x8xf32, #tpu.memory_space<vmem>>, %arg3: memref<128x8xf32, #tpu.memory_space<vmem>>, %arg4: memref<128x128xi8, #tpu.memory_space<vmem>>, %arg5: memref<128x1xf32, #tpu.memory_space<vmem>>, %arg6: memref<128x1xf32, #tpu.memory_space<vmem>>, %arg7: memref<8x128xf32, #tpu.memory_space<vmem>>, %arg8: memref<8x128xf32, #tpu.memory_space<vmem>>, %arg9: memref<128x128xbf16, #tpu.memory_space<vmem>>, %arg10: memref<8x128xf32, #tpu.memory_space<vmem>>, %arg11: memref<128x128xf32, #tpu.memory_space<vmem>>, %arg12: memref<128x128xf32, #tpu.memory_space<vmem>>) attributes {dimension_semantics = [#tpu.dimension_semantics<parallel>, #tpu.dimension_semantics<arbitrary>], iteration_bounds = array<i64: 1, 1>, scalar_prefetch = 0 : i64, scratch_operands = 1 : i64, tpu.core_type = #tpu.core_type<tc>, window_params = [{transform_indices = @transform_0, window_bounds = array<i64: 128, 8>}, {transform_indices = @transform_1, window_bounds = array<i64: 128, 8>}, {transform_indices = @transform_2, window_bounds = array<i64: 128, 128>}, {transform_indices = @transform_3, window_bounds = array<i64: 128, 1>}, {transform_indices = @transform_4, window_bounds = array<i64: 128, 1>}, {pipeline_mode = #tpu.pipeline_mode<synchronous>, transform_indices = @transform_5, window_bounds = array<i64: 8, 128>}, {pipeline_mode = #tpu.pipeline_mode<synchronous>, transform_indices = @transform_6, window_bounds = array<i64: 8, 128>}, {pipeline_mode = #tpu.pipeline_mode<synchronous>, transform_indices = @transform_7, window_bounds = array<i64: 128, 128>}, {pipeline_mode = #tpu.pipeline_mode<synchronous>, transform_indices = @transform_8, window_bounds = array<i64: 8, 128>}, {transform_indices = @transform_9, window_bounds = array<i64: 128, 128>}]} {
    %c0_i32 = arith.constant 0 : i32
    %0 = arith.cmpi eq, %arg1, %c0_i32 : i32
    %1 = arith.extui %0 : i1 to i32
    %c0_i32_0 = arith.constant 0 : i32
    %2 = arith.cmpi ne, %1, %c0_i32_0 : i32
    scf.if %2 {
      %cst_15 = arith.constant 0.000000e+00 : f32
      %19 = vector.broadcast %cst_15 : f32 to vector<128x128xf32>
      %c0_16 = arith.constant 0 : index
      %c0_17 = arith.constant 0 : index
      %20 = vector.load %arg12[%c0_16, %c0_17] : memref<128x128xf32, #tpu.memory_space<vmem>>, vector<128x128xf32>
      tpu.vector_store %arg12[%c0_16, %c0_17], %19 {strides = array<i32>} : memref<128x128xf32, #tpu.memory_space<vmem>>, vector<128x128xf32>,
    } else {
    }
    %c0 = arith.constant 0 : index
    %c0_1 = arith.constant 0 : index
    %3 = vector.load %arg3[%c0, %c0_1] : memref<128x8xf32, #tpu.memory_space<vmem>>, vector<128x8xf32>
    %c0_2 = arith.constant 0 : index
    %c0_3 = arith.constant 0 : index
    %4 = vector.load %arg7[%c0_2, %c0_3] : memref<8x128xf32, #tpu.memory_space<vmem>>, vector<8x128xf32>
    %cst = arith.constant dense<0.000000e+00> : vector<128x128xf32>
    %5 = tpu.matmul %3, %4, %cst {dimension_numbers = #tpu.dot_dimension_numbers<[1], [0], [0], [1], [0, 0, 1, 1], [], []>} : vector<128x8xf32>, vector<8x128xf32>, vector<128x128xf32> -> vector<128x128xf32>
    %c0_4 = arith.constant 0 : index
    %c0_5 = arith.constant 0 : index
    %6 = vector.load %arg6[%c0_4, %c0_5] : memref<128x1xf32, #tpu.memory_space<vmem>>, vector<128x1xf32>
    %7 = vector.broadcast %6 : vector<128x1xf32> to vector<128x128xf32>
    %8 = arith.mulf %5, %7 : vector<128x128xf32>
    %9 = arith.truncf %8 : vector<128x128xf32> to vector<128x128xbf16>
    %c0_6 = arith.constant 0 : index
    %c0_7 = arith.constant 0 : index
    %10 = vector.load %arg4[%c0_6, %c0_7] : memref<128x128xi8, #tpu.memory_space<vmem>>, vector<128x128xi8>
    %11 = arith.sitofp %10 : vector<128x128xi8> to vector<128x128xbf16>
    %c0_8 = arith.constant 0 : index
    %c0_9 = arith.constant 0 : index
    %12 = vector.load %arg12[%c0_8, %c0_9] : memref<128x128xf32, #tpu.memory_space<vmem>>, vector<128x128xf32>
    %cst_10 = arith.constant dense<0.000000e+00> : vector<128x128xf32>
    %13 = tpu.matmul %11, %9, %cst_10 {dimension_numbers = #tpu.dot_dimension_numbers<[1], [0], [0], [1], [0, 0, 1, 1], [], []>} : vector<128x128xbf16>, vector<128x128xbf16>, vector<128x128xf32> -> vector<128x128xf32>
    %14 = arith.addf %12, %13 : vector<128x128xf32>
    %c0_11 = arith.constant 0 : index
    %c0_12 = arith.constant 0 : index
    %15 = vector.load %arg12[%c0_11, %c0_12] : memref<128x128xf32, #tpu.memory_space<vmem>>, vector<128x128xf32>
    tpu.vector_store %arg12[%c0_11, %c0_12], %14 {strides = array<i32>} : memref<128x128xf32, #tpu.memory_space<vmem>>, vector<128x128xf32>,
    %c0_i32_13 = arith.constant 0 : i32
    %16 = arith.cmpi eq, %arg1, %c0_i32_13 : i32
    %17 = arith.extui %16 : i1 to i32
    %c0_i32_14 = arith.constant 0 : i32
    %18 = arith.cmpi ne, %17, %c0_i32_14 : i32
    scf.if %18 {
      %c0_15 = arith.constant 0 : index
      %c0_16 = arith.constant 0 : index
      %19 = vector.load %arg10[%c0_15, %c0_16] : memref<8x128xf32, #tpu.memory_space<vmem>>, vector<8x128xf32>
      %20 = vector.extract_strided_slice %19 {offsets = [0, 0], sizes = [1, 128], strides = [1, 1]} : vector<8x128xf32> to vector<1x128xf32>
      %21 = vector.extract_strided_slice %19 {offsets = [1, 0], sizes = [1, 128], strides = [1, 1]} : vector<8x128xf32> to vector<1x128xf32>
      %22 = vector.extract_strided_slice %19 {offsets = [2, 0], sizes = [1, 128], strides = [1, 1]} : vector<8x128xf32> to vector<1x128xf32>
      %23 = vector.extract_strided_slice %19 {offsets = [3, 0], sizes = [1, 128], strides = [1, 1]} : vector<8x128xf32> to vector<1x128xf32>
      %24 = vector.extract_strided_slice %19 {offsets = [4, 0], sizes = [1, 128], strides = [1, 1]} : vector<8x128xf32> to vector<1x128xf32>
      %c0_17 = arith.constant 0 : index
      %c0_18 = arith.constant 0 : index
      %25 = vector.load %arg12[%c0_17, %c0_18] : memref<128x128xf32, #tpu.memory_space<vmem>>, vector<128x128xf32>
      %c0_19 = arith.constant 0 : index
      %c0_20 = arith.constant 0 : index
      %26 = vector.load %arg5[%c0_19, %c0_20] : memref<128x1xf32, #tpu.memory_space<vmem>>, vector<128x1xf32>
      %27 = vector.broadcast %26 : vector<128x1xf32> to vector<128x128xf32>
      %28 = arith.mulf %25, %27 : vector<128x128xf32>
      %29 = vector.broadcast %20 : vector<1x128xf32> to vector<128x128xf32>
      %30 = arith.addf %28, %29 : vector<128x128xf32>
      %31 = math.tanh %30 : vector<128x128xf32>
      %32 = arith.truncf %31 : vector<128x128xf32> to vector<128x128xbf16>
      %c0_21 = arith.constant 0 : index
      %c0_22 = arith.constant 0 : index
      %33 = vector.load %arg9[%c0_21, %c0_22] : memref<128x128xbf16, #tpu.memory_space<vmem>>, vector<128x128xbf16>
      %cst_23 = arith.constant dense<0.000000e+00> : vector<128x128xf32>
      %34 = tpu.matmul %32, %33, %cst_23 {dimension_numbers = #tpu.dot_dimension_numbers<[1], [0], [0], [1], [0, 0, 1, 1], [], []>} : vector<128x128xbf16>, vector<128x128xbf16>, vector<128x128xf32> -> vector<128x128xf32>
      %35 = vector.broadcast %21 : vector<1x128xf32> to vector<128x128xf32>
      %36 = arith.addf %34, %35 : vector<128x128xf32>
      %37 = arith.negf %36 : vector<128x128xf32>
      %38 = math.exp %37 : vector<128x128xf32>
      %cst_24 = arith.constant 1.000000e+00 : f32
      %39 = vector.broadcast %cst_24 : f32 to vector<128x128xf32>
      %40 = arith.addf %39, %38 : vector<128x128xf32>
      %41 = arith.divf %39, %40 : vector<128x128xf32>
      %c0_25 = arith.constant 0 : index
      %c0_26 = arith.constant 0 : index
      %42 = vector.load %arg2[%c0_25, %c0_26] : memref<128x8xf32, #tpu.memory_space<vmem>>, vector<128x8xf32>
      %c0_27 = arith.constant 0 : index
      %c0_28 = arith.constant 0 : index
      %43 = vector.load %arg8[%c0_27, %c0_28] : memref<8x128xf32, #tpu.memory_space<vmem>>, vector<8x128xf32>
      %cst_29 = arith.constant dense<0.000000e+00> : vector<128x128xf32>
      %44 = tpu.matmul %42, %43, %cst_29 {dimension_numbers = #tpu.dot_dimension_numbers<[1], [0], [0], [1], [0, 0, 1, 1], [], []>} : vector<128x8xf32>, vector<8x128xf32>, vector<128x128xf32> -> vector<128x128xf32>
      %45 = vector.broadcast %22 : vector<1x128xf32> to vector<128x128xf32>
      %46 = arith.addf %44, %45 : vector<128x128xf32>
      %cst_30 = arith.constant 1.000000e+00 : f32
      %47 = vector.broadcast %cst_30 : f32 to vector<128x128xf32>
      %48 = arith.subf %47, %41 : vector<128x128xf32>
      %49 = arith.mulf %48, %46 : vector<128x128xf32>
      %50 = arith.mulf %41, %31 : vector<128x128xf32>
      %51 = arith.addf %49, %50 : vector<128x128xf32>
      %cst_31 = arith.constant 0.000000e+00 : f32
      %52 = vector.broadcast %cst_31 : f32 to vector<128x128xf32>
      %53 = arith.maximumf %51, %52 : vector<128x128xf32>
      %54 = vector.broadcast %23 : vector<1x128xf32> to vector<128x128xf32>
      %55 = arith.mulf %53, %54 : vector<128x128xf32>
      %56 = vector.broadcast %24 : vector<1x128xf32> to vector<128x128xf32>
      %57 = arith.addf %55, %56 : vector<128x128xf32>
      %c0_32 = arith.constant 0 : index
      %c0_33 = arith.constant 0 : index
      %58 = vector.load %arg11[%c0_32, %c0_33] : memref<128x128xf32, #tpu.memory_space<vmem>>, vector<128x128xf32>
      tpu.vector_store %arg11[%c0_32, %c0_33], %57 {strides = array<i32>} : memref<128x128xf32, #tpu.memory_space<vmem>>, vector<128x128xf32>,
    } else {
    }
    return
  }
  func.func @transform_0(%arg0: i32, %arg1: i32) -> (i32, i32) {
    %c0_i32 = arith.constant 0 : i32
    %c0_i32_0 = arith.constant 0 : i32
    return %arg0, %c0_i32 : i32, i32
  }
  func.func @transform_1(%arg0: i32, %arg1: i32) -> (i32, i32) {
    %c0_i32 = arith.constant 0 : i32
    %c0_i32_0 = arith.constant 0 : i32
    return %arg1, %c0_i32 : i32, i32
  }
  func.func @transform_2(%arg0: i32, %arg1: i32) -> (i32, i32) {
    %c0_i32 = arith.constant 0 : i32
    return %arg0, %arg1 : i32, i32
  }
  func.func @transform_3(%arg0: i32, %arg1: i32) -> (i32, i32) {
    %c0_i32 = arith.constant 0 : i32
    %c0_i32_0 = arith.constant 0 : i32
    return %arg0, %c0_i32 : i32, i32
  }
  func.func @transform_4(%arg0: i32, %arg1: i32) -> (i32, i32) {
    %c0_i32 = arith.constant 0 : i32
    %c0_i32_0 = arith.constant 0 : i32
    return %arg1, %c0_i32 : i32, i32
  }
  func.func @transform_5(%arg0: i32, %arg1: i32) -> (i32, i32) {
    %c0_i32 = arith.constant 0 : i32
    %c0_i32_0 = arith.constant 0 : i32
    %c0_i32_1 = arith.constant 0 : i32
    return %c0_i32, %c0_i32_0 : i32, i32
  }
  func.func @transform_6(%arg0: i32, %arg1: i32) -> (i32, i32) {
    %c0_i32 = arith.constant 0 : i32
    %c0_i32_0 = arith.constant 0 : i32
    %c0_i32_1 = arith.constant 0 : i32
    return %c0_i32, %c0_i32_0 : i32, i32
  }
  func.func @transform_7(%arg0: i32, %arg1: i32) -> (i32, i32) {
    %c0_i32 = arith.constant 0 : i32
    %c0_i32_0 = arith.constant 0 : i32
    %c0_i32_1 = arith.constant 0 : i32
    return %c0_i32, %c0_i32_0 : i32, i32
  }
  func.func @transform_8(%arg0: i32, %arg1: i32) -> (i32, i32) {
    %c0_i32 = arith.constant 0 : i32
    %c0_i32_0 = arith.constant 0 : i32
    %c0_i32_1 = arith.constant 0 : i32
    return %c0_i32, %c0_i32_0 : i32, i32
  }
  func.func @transform_9(%arg0: i32, %arg1: i32) -> (i32, i32) {
    %c0_i32 = arith.constant 0 : i32
    %c0_i32_0 = arith.constant 0 : i32
    return %arg0, %c0_i32 : i32, i32
  }
}

</mosaic_0001>

<llo_original>
// kernel: tpu_custom_call.1
$region0: #{tpu_custom_call.1}
  #allocation0 [shape = 'u32[]', space=smem, size = 0x4, offset = 0x4, fixed_abs, tag = 'smem constant byte address 0x4 - core index']
  #allocation1 [shape = 'u32[72,128]{1,0:T(1,128)}', space=vmem, size = 0x9000, scoped, tag = 'internal scratch']
  #allocation2 [shape = 'f32[128,128]{1,0:T(8,128)}', space=vmem, size = 0x10000, scoped, tag = 'scratch operand']
  %s0 = inlined_call_operand.vmem [shape: f32[128,8], index: 0, kind: input, shape index: {}]
  %s1 = inlined_call_operand.vmem [shape: f32[128,8], index: 1, kind: input, shape index: {}]
  %s2 = inlined_call_operand.vmem [shape: s8[128,128], index: 2, kind: input, shape index: {}]
  %s3 = inlined_call_operand.vmem [shape: f32[128,1], index: 3, kind: input, shape index: {}]
  %s4 = inlined_call_operand.vmem [shape: f32[128,1], index: 4, kind: input, shape index: {}]
  %s5 = inlined_call_operand.vmem [shape: f32[8,128], index: 5, kind: input, shape index: {}]
  %s6 = inlined_call_operand.vmem [shape: f32[8,128], index: 6, kind: input, shape index: {}]
  %s7 = inlined_call_operand.vmem [shape: bf16[128,128], index: 7, kind: input, shape index: {}]
  %s8 = inlined_call_operand.vmem [shape: f32[8,128], index: 8, kind: input, shape index: {}]
  %s9 = inlined_call_operand.hbm [shape: f32[128,128], index: 9, kind: output, shape index: {}]
  %s10 = sld [smem:[#allocation0]]
  $region54: #{tpu_custom_call.1} parent=0
    _
  %s12 = ssub.s32 1, %s10
  %s13 = scalar_select 0, %s12, %s10
  $region1: #{tpu_custom_call.1} parent=0
    #allocation3 [shape = 'u8[65536]{0}', space=vmem, size = 0x10000, scoped, tag = 'output window, operand 0, single buffered']
    #allocation4 [shape = 's32[1]{0}', space=sflag, size = 0x4, scoped, tag = 'scoped memory for tpu_custom_call.1']
    %14 = vsyncpa [#allocation4], 0
    // Predicated region
    $region2: #{tpu_custom_call.1} parent=1 // pred_check
      _
    $region3: #{tpu_custom_call.1} parent=1 // pred_check_branch
      %16 = sbr.rel (0) target = $region5
    $region4: #{tpu_custom_call.1} parent=1 // pred_region
      _
    $region5: #{tpu_custom_call.1} parent=1 // pred_fallthru
      _
    // Predicated region
    $region6: #{tpu_custom_call.1} parent=1 // pred_check
      _
    $region7: #{tpu_custom_call.1} parent=1 // pred_check_branch
      %18 = sbr.rel (0) target = $region9
    $region8: #{tpu_custom_call.1} parent=1 // pred_region
      _
    $region9: #{tpu_custom_call.1} parent=1 // pred_fallthru
      _
    // Predicated region
    $region10: #{tpu_custom_call.1} parent=1 // pred_check
      _
    $region11: #{tpu_custom_call.1} parent=1 // pred_check_branch
      %20 = sbr.rel (0) target = $region13
    $region12: #{tpu_custom_call.1} parent=1 // pred_region
      _
    $region13: #{tpu_custom_call.1} parent=1 // pred_fallthru
      _
    // Predicated region
    $region14: #{tpu_custom_call.1} parent=1 // pred_check
      _
    $region15: #{tpu_custom_call.1} parent=1 // pred_check_branch
      %22 = sbr.rel (0) target = $region17
    $region16: #{tpu_custom_call.1} parent=1 // pred_region
      _
    $region17: #{tpu_custom_call.1} parent=1 // pred_fallthru
      _
    // Predicated region
    $region18: #{tpu_custom_call.1} parent=1 // pred_check
      _
    $region19: #{tpu_custom_call.1} parent=1 // pred_check_branch
      %24 = sbr.rel (0) target = $region21
    $region20: #{tpu_custom_call.1} parent=1 // pred_region
      _
    $region21: #{tpu_custom_call.1} parent=1 // pred_fallthru
      _
    // Predicated region
    $region22: #{tpu_custom_call.1} parent=1 // pred_check
      _
    $region23: #{tpu_custom_call.1} parent=1 // pred_check_branch
      %26 = sbr.rel (0) target = $region25
    $region24: #{tpu_custom_call.1} parent=1 // pred_region
      _
    $region25: #{tpu_custom_call.1} parent=1 // pred_fallthru
      _
    // Predicated region
    $region26: #{tpu_custom_call.1} parent=1 // pred_check
      _
    $region27: #{tpu_custom_call.1} parent=1 // pred_check_branch
      %28 = sbr.rel (0) target = $region29
    $region28: #{tpu_custom_call.1} parent=1 // pred_region
      _
    $region29: #{tpu_custom_call.1} parent=1 // pred_fallthru
      _
    // Predicated region
    $region30: #{tpu_custom_call.1} parent=1 // pred_check
      _
    $region31: #{tpu_custom_call.1} parent=1 // pred_check_branch
      %30 = sbr.rel (0) target = $region33
    $region32: #{tpu_custom_call.1} parent=1 // pred_region
      _
    $region33: #{tpu_custom_call.1} parent=1 // pred_fallthru
      _
    // Predicated region
    $region34: #{tpu_custom_call.1} parent=1 // pred_check
      _
    $region35: #{tpu_custom_call.1} parent=1 // pred_check_branch
      %32 = sbr.rel (0) target = $region37
    $region36: #{tpu_custom_call.1} parent=1 // pred_region
      _
    $region37: #{tpu_custom_call.1} parent=1 // pred_fallthru
      _
    %p33 = scmp.eq.s32.totalorder 0, 0
    // Predicated region
    $region38: #{tpu_custom_call.1} parent=1 // pred_check
      %p34 = pneg %p33
    $region39: #{tpu_custom_call.1} parent=1 // pred_check_branch
      %36 = sbr.rel (%p34) target = $region41
    $region40: #{tpu_custom_call.1} parent=1 // pred_region
      %37 = vst [vmem:[#allocation2] sm:$0xff] 0.0
      %38 = vst [vmem:[#allocation2 + $0x8] sm:$0xff] 0.0
      %39 = vst [vmem:[#allocation2 + $0x10] sm:$0xff] 0.0
      %40 = vst [vmem:[#allocation2 + $0x18] sm:$0xff] 0.0
      %41 = vst [vmem:[#allocation2 + $0x20] sm:$0xff] 0.0
      %42 = vst [vmem:[#allocation2 + $0x28] sm:$0xff] 0.0
      %43 = vst [vmem:[#allocation2 + $0x30] sm:$0xff] 0.0
      %44 = vst [vmem:[#allocation2 + $0x38] sm:$0xff] 0.0
      %45 = vst [vmem:[#allocation2 + $0x40] sm:$0xff] 0.0
      %46 = vst [vmem:[#allocation2 + $0x48] sm:$0xff] 0.0
      %47 = vst [vmem:[#allocation2 + $0x50] sm:$0xff] 0.0
      %48 = vst [vmem:[#allocation2 + $0x58] sm:$0xff] 0.0
      %49 = vst [vmem:[#allocation2 + $0x60] sm:$0xff] 0.0
      %50 = vst [vmem:[#allocation2 + $0x68] sm:$0xff] 0.0
      %51 = vst [vmem:[#allocation2 + $0x70] sm:$0xff] 0.0
      %52 = vst [vmem:[#allocation2 + $0x78] sm:$0xff] 0.0
    $region41: #{tpu_custom_call.1} parent=1 // pred_fallthru
      _
    %v53 = vld [vmem:[%s1] sm:$0xff]
    %v54 = vld [vmem:[%s1 + $0x8] sm:$0xff]
    %v55 = vld [vmem:[%s1 + $0x10] sm:$0xff]
    %v56 = vld [vmem:[%s1 + $0x18] sm:$0xff]
    %v57 = vld [vmem:[%s1 + $0x20] sm:$0xff]
    %v58 = vld [vmem:[%s1 + $0x28] sm:$0xff]
    %v59 = vld [vmem:[%s1 + $0x30] sm:$0xff]
    %v60 = vld [vmem:[%s1 + $0x38] sm:$0xff]
    %v61 = vld [vmem:[%s1 + $0x40] sm:$0xff]
    %v62 = vld [vmem:[%s1 + $0x48] sm:$0xff]
    %v63 = vld [vmem:[%s1 + $0x50] sm:$0xff]
    %v64 = vld [vmem:[%s1 + $0x58] sm:$0xff]
    %v65 = vld [vmem:[%s1 + $0x60] sm:$0xff]
    %v66 = vld [vmem:[%s1 + $0x68] sm:$0xff]
    %v67 = vld [vmem:[%s1 + $0x70] sm:$0xff]
    %v68 = vld [vmem:[%s1 + $0x78] sm:$0xff]
    %v69 = vld [vmem:[%s5] sm:$0xff]
    %vm70 = vcmask 64512
    %v72 = vsel %vm70, %v53, 0
    %v75 = vsel %vm70, %v54, 0
    %v78 = vsel %vm70, %v55, 0
    %v81 = vsel %vm70, %v56, 0
    %v84 = vsel %vm70, %v57, 0
    %v87 = vsel %vm70, %v58, 0
    %v90 = vsel %vm70, %v59, 0
    %v93 = vsel %vm70, %v60, 0
    %v96 = vsel %vm70, %v61, 0
    %v99 = vsel %vm70, %v62, 0
    %v102 = vsel %vm70, %v63, 0
    %v105 = vsel %vm70, %v64, 0
    %v108 = vsel %vm70, %v65, 0
    %v111 = vsel %vm70, %v66, 0
    %v114 = vsel %vm70, %v67, 0
    %v117 = vsel %vm70, %v68, 0
    %119 = vmatpush.msra.mxu0 0.0
    %120 = vmatpush.msra.mxu0 0.0
    %121 = vmatpush.msra.mxu0 0.0
    %122 = vmatpush.msra.mxu0 0.0
    %123 = vmatpush.msra.mxu0 0.0
    %124 = vmatpush.msra.mxu0 0.0
    %125 = vmatpush.msra.mxu0 0.0
    %126 = vmatpush.msra.mxu0 0.0
    %127 = vmatpush.msra.mxu0 0.0
    %128 = vmatpush.msra.mxu0 0.0
    %129 = vmatpush.msra.mxu0 0.0
    %130 = vmatpush.msra.mxu0 0.0
    %131 = vmatpush.msra.mxu0 0.0
    %132 = vmatpush.msra.mxu0 0.0
    %133 = vmatpush.msra.mxu0 0.0
    %134 = vmatpush.msra.mxu0 %v69
    %135 = vmatmul.f32.gmra.mxu0 %v72
    %v136 = vpop.f32.mrf.mxu0
    %v137 = vadd.f32 0.0, %v136
    %138 = vmatmul.f32.gmra.mxu0 %v75
    %v139 = vpop.f32.mrf.mxu0
    %v140 = vadd.f32 0.0, %v139
    %141 = vmatmul.f32.gmra.mxu0 %v78
    %v142 = vpop.f32.mrf.mxu0
    %v143 = vadd.f32 0.0, %v142
    %144 = vmatmul.f32.gmra.mxu0 %v81
    %v145 = vpop.f32.mrf.mxu0
    %v146 = vadd.f32 0.0, %v145
    %147 = vmatmul.f32.gmra.mxu0 %v84
    %v148 = vpop.f32.mrf.mxu0
    %v149 = vadd.f32 0.0, %v148
    %150 = vmatmul.f32.gmra.mxu0 %v87
    %v151 = vpop.f32.mrf.mxu0
    %v152 = vadd.f32 0.0, %v151
    %153 = vmatmul.f32.gmra.mxu0 %v90
    %v154 = vpop.f32.mrf.mxu0
    %v155 = vadd.f32 0.0, %v154
    %156 = vmatmul.f32.gmra.mxu0 %v93
    %v157 = vpop.f32.mrf.mxu0
    %v158 = vadd.f32 0.0, %v157
    %159 = vmatmul.f32.gmra.mxu0 %v96
    %v160 = vpop.f32.mrf.mxu0
    %v161 = vadd.f32 0.0, %v160
    %162 = vmatmul.f32.gmra.mxu0 %v99
    %v163 = vpop.f32.mrf.mxu0
    %v164 = vadd.f32 0.0, %v163
    %165 = vmatmul.f32.gmra.mxu0 %v102
    %v166 = vpop.f32.mrf.mxu0
    %v167 = vadd.f32 0.0, %v166
    %168 = vmatmul.f32.gmra.mxu0 %v105
    %v169 = vpop.f32.mrf.mxu0
    %v170 = vadd.f32 0.0, %v169
    %171 = vmatmul.f32.gmra.mxu0 %v108
    %v172 = vpop.f32.mrf.mxu0
    %v173 = vadd.f32 0.0, %v172
    %174 = vmatmul.f32.gmra.mxu0 %v111
    %v175 = vpop.f32.mrf.mxu0
    %v176 = vadd.f32 0.0, %v175
    %177 = vmatmul.f32.gmra.mxu0 %v114
    %v178 = vpop.f32.mrf.mxu0
    %v179 = vadd.f32 0.0, %v178
    %180 = vmatmul.f32.gmra.mxu0 %v117
    %v181 = vpop.f32.mrf.mxu0
    %v182 = vadd.f32 0.0, %v181
    %183 = vdwg.mxu0
    %v184 = vld [vmem:[%s4] sm:$0xff]
    %v185 = vld [vmem:[%s4 + $0x8] sm:$0xff]
    %v186 = vld [vmem:[%s4 + $0x10] sm:$0xff]
    %v187 = vld [vmem:[%s4 + $0x18] sm:$0xff]
    %v188 = vld [vmem:[%s4 + $0x20] sm:$0xff]
    %v189 = vld [vmem:[%s4 + $0x28] sm:$0xff]
    %v190 = vld [vmem:[%s4 + $0x30] sm:$0xff]
    %v191 = vld [vmem:[%s4 + $0x38] sm:$0xff]
    %v192 = vld [vmem:[%s4 + $0x40] sm:$0xff]
    %v193 = vld [vmem:[%s4 + $0x48] sm:$0xff]
    %v194 = vld [vmem:[%s4 + $0x50] sm:$0xff]
    %v195 = vld [vmem:[%s4 + $0x58] sm:$0xff]
    %v196 = vld [vmem:[%s4 + $0x60] sm:$0xff]
    %v197 = vld [vmem:[%s4 + $0x68] sm:$0xff]
    %v198 = vld [vmem:[%s4 + $0x70] sm:$0xff]
    %v199 = vld [vmem:[%s4 + $0x78] sm:$0xff]
    %201 = vset.pattern.permute.xlu0 0
    %202 = vperm.xlu0 %201, %v184
    %v203 = vpop.permute.xlu0 %202
    %206 = vset.pattern.permute.xlu0 0
    %207 = vperm.xlu0 %206, %v185
    %v208 = vpop.permute.xlu0 %207
    %211 = vset.pattern.permute.xlu0 0
    %212 = vperm.xlu0 %211, %v186
    %v213 = vpop.permute.xlu0 %212
    %216 = vset.pattern.permute.xlu0 0
    %217 = vperm.xlu0 %216, %v187
    %v218 = vpop.permute.xlu0 %217
    %221 = vset.pattern.permute.xlu0 0
    %222 = vperm.xlu0 %221, %v188
    %v223 = vpop.permute.xlu0 %222
    %226 = vset.pattern.permute.xlu0 0
    %227 = vperm.xlu0 %226, %v189
    %v228 = vpop.permute.xlu0 %227
    %231 = vset.pattern.permute.xlu0 0
    %232 = vperm.xlu0 %231, %v190
    %v233 = vpop.permute.xlu0 %232
    %236 = vset.pattern.permute.xlu0 0
    %237 = vperm.xlu0 %236, %v191
    %v238 = vpop.permute.xlu0 %237
    %241 = vset.pattern.permute.xlu0 0
    %242 = vperm.xlu0 %241, %v192
    %v243 = vpop.permute.xlu0 %242
    %246 = vset.pattern.permute.xlu0 0
    %247 = vperm.xlu0 %246, %v193
    %v248 = vpop.permute.xlu0 %247
    %251 = vset.pattern.permute.xlu0 0
    %252 = vperm.xlu0 %251, %v194
    %v253 = vpop.permute.xlu0 %252
    %256 = vset.pattern.permute.xlu0 0
    %257 = vperm.xlu0 %256, %v195
    %v258 = vpop.permute.xlu0 %257
    %261 = vset.pattern.permute.xlu0 0
    %262 = vperm.xlu0 %261, %v196
    %v263 = vpop.permute.xlu0 %262
    %266 = vset.pattern.permute.xlu0 0
    %267 = vperm.xlu0 %266, %v197
    %v268 = vpop.permute.xlu0 %267
    %271 = vset.pattern.permute.xlu0 0
    %272 = vperm.xlu0 %271, %v198
    %v273 = vpop.permute.xlu0 %272
    %276 = vset.pattern.permute.xlu0 0
    %277 = vperm.xlu0 %276, %v199
    %v278 = vpop.permute.xlu0 %277
    %v280 = vmul.f32 %v137, %v203
    %v281 = vmul.f32 %v140, %v208
    %v282 = vmul.f32 %v143, %v213
    %v283 = vmul.f32 %v146, %v218
    %v284 = vmul.f32 %v149, %v223
    %v285 = vmul.f32 %v152, %v228
    %v286 = vmul.f32 %v155, %v233
    %v287 = vmul.f32 %v158, %v238
    %v288 = vmul.f32 %v161, %v243
    %v289 = vmul.f32 %v164, %v248
    %v290 = vmul.f32 %v167, %v253
    %v291 = vmul.f32 %v170, %v258
    %v292 = vmul.f32 %v173, %v263
    %v293 = vmul.f32 %v176, %v268
    %v294 = vmul.f32 %v179, %v273
    %v295 = vmul.f32 %v182, %v278
    %v296 = vpack.c.bf16 %v281, %v280
    %v297 = vpack.c.bf16 %v283, %v282
    %v298 = vpack.c.bf16 %v285, %v284
    %v299 = vpack.c.bf16 %v287, %v286
    %v300 = vpack.c.bf16 %v289, %v288
    %v301 = vpack.c.bf16 %v291, %v290
    %v302 = vpack.c.bf16 %v293, %v292
    %v303 = vpack.c.bf16 %v295, %v294
    %v304 = vld [vmem:[%s2] sm:$0xff]
    %v305 = vld [vmem:[%s2 + $0x8] sm:$0xff]
    %v306 = vld [vmem:[%s2 + $0x10] sm:$0xff]
    %v307 = vld [vmem:[%s2 + $0x18] sm:$0xff]
    %v308 = vunpack.c.0.s8 %v304
    %v309 = vunpack.c.1.s8 %v304
    %v310 = vunpack.c.2.s8 %v304
    %v311 = vunpack.c.3.s8 %v304
    %v312 = vunpack.c.0.s8 %v305
    %v313 = vunpack.c.1.s8 %v305
    %v314 = vunpack.c.2.s8 %v305
    %v315 = vunpack.c.3.s8 %v305
    %v316 = vunpack.c.0.s8 %v306
    %v317 = vunpack.c.1.s8 %v306
    %v318 = vunpack.c.2.s8 %v306
    %v319 = vunpack.c.3.s8 %v306
    %v320 = vunpack.c.0.s8 %v307
    %v321 = vunpack.c.1.s8 %v307
    %v322 = vunpack.c.2.s8 %v307
    %v323 = vunpack.c.3.s8 %v307
    %v324 = vcvt.s32.f32 %v308
    %v325 = vcvt.s32.f32 %v309
    %v326 = vcvt.s32.f32 %v310
    %v327 = vcvt.s32.f32 %v311
    %v328 = vcvt.s32.f32 %v312
    %v329 = vcvt.s32.f32 %v313
    %v330 = vcvt.s32.f32 %v314
    %v331 = vcvt.s32.f32 %v315
    %v332 = vcvt.s32.f32 %v316
    %v333 = vcvt.s32.f32 %v317
    %v334 = vcvt.s32.f32 %v318
    %v335 = vcvt.s32.f32 %v319
    %v336 = vcvt.s32.f32 %v320
    %v337 = vcvt.s32.f32 %v321
    %v338 = vcvt.s32.f32 %v322
    %v339 = vcvt.s32.f32 %v323
    %v340 = vpack.c.bf16 %v325, %v324
    %v341 = vpack.c.bf16 %v327, %v326
    %v342 = vpack.c.bf16 %v329, %v328
    %v343 = vpack.c.bf16 %v331, %v330
    %v344 = vpack.c.bf16 %v333, %v332
    %v345 = vpack.c.bf16 %v335, %v334
    %v346 = vpack.c.bf16 %v337, %v336
    %v347 = vpack.c.bf16 %v339, %v338
    %v348 = vld [vmem:[#allocation2] sm:$0xff]
    %v349 = vld [vmem:[#allocation2 + $0x8] sm:$0xff]
    %v350 = vld [vmem:[#allocation2 + $0x10] sm:$0xff]
    %v351 = vld [vmem:[#allocation2 + $0x18] sm:$0xff]
    %v352 = vld [vmem:[#allocation2 + $0x20] sm:$0xff]
    %v353 = vld [vmem:[#allocation2 + $0x28] sm:$0xff]
    %v354 = vld [vmem:[#allocation2 + $0x30] sm:$0xff]
    %v355 = vld [vmem:[#allocation2 + $0x38] sm:$0xff]
    %v356 = vld [vmem:[#allocation2 + $0x40] sm:$0xff]
    %v357 = vld [vmem:[#allocation2 + $0x48] sm:$0xff]
    %v358 = vld [vmem:[#allocation2 + $0x50] sm:$0xff]
    %v359 = vld [vmem:[#allocation2 + $0x58] sm:$0xff]
    %v360 = vld [vmem:[#allocation2 + $0x60] sm:$0xff]
    %v361 = vld [vmem:[#allocation2 + $0x68] sm:$0xff]
    %v362 = vld [vmem:[#allocation2 + $0x70] sm:$0xff]
    %v363 = vld [vmem:[#allocation2 + $0x78] sm:$0xff]
    %364 = vmatpush.bf16.msra.mxu0 %v303
    %365 = vmatpush.bf16.msra.mxu0 %v302
    %366 = vmatpush.bf16.msra.mxu0 %v301
    %367 = vmatpush.bf16.msra.mxu0 %v300
    %368 = vmatpush.bf16.msra.mxu0 %v299
    %369 = vmatpush.bf16.msra.mxu0 %v298
    %370 = vmatpush.bf16.msra.mxu0 %v297
    %371 = vmatpush.bf16.msra.mxu0 %v296
    %372 = vmatmul.bf16.gmra.mxu0 %v340
    %v373 = vpop.f32.mrf.mxu0
    %v374 = vadd.f32 0.0, %v373
    %v375 = vpop.f32.mrf.mxu0
    %v376 = vadd.f32 0.0, %v375
    %377 = vmatmul.bf16.gmra.mxu0 %v341
    %v378 = vpop.f32.mrf.mxu0
    %v379 = vadd.f32 0.0, %v378
    %v380 = vpop.f32.mrf.mxu0
    %v381 = vadd.f32 0.0, %v380
    %382 = vmatmul.bf16.gmra.mxu0 %v342
    %v383 = vpop.f32.mrf.mxu0
    %v384 = vadd.f32 0.0, %v383
    %v385 = vpop.f32.mrf.mxu0
    %v386 = vadd.f32 0.0, %v385
    %387 = vmatmul.bf16.gmra.mxu0 %v343
    %v388 = vpop.f32.mrf.mxu0
    %v389 = vadd.f32 0.0, %v388
    %v390 = vpop.f32.mrf.mxu0
    %v391 = vadd.f32 0.0, %v390
    %392 = vmatmul.bf16.gmra.mxu0 %v344
    %v393 = vpop.f32.mrf.mxu0
    %v394 = vadd.f32 0.0, %v393
    %v395 = vpop.f32.mrf.mxu0
    %v396 = vadd.f32 0.0, %v395
    %397 = vmatmul.bf16.gmra.mxu0 %v345
    %v398 = vpop.f32.mrf.mxu0
    %v399 = vadd.f32 0.0, %v398
    %v400 = vpop.f32.mrf.mxu0
    %v401 = vadd.f32 0.0, %v400
    %402 = vmatmul.bf16.gmra.mxu0 %v346
    %v403 = vpop.f32.mrf.mxu0
    %v404 = vadd.f32 0.0, %v403
    %v405 = vpop.f32.mrf.mxu0
    %v406 = vadd.f32 0.0, %v405
    %407 = vmatmul.bf16.gmra.mxu0 %v347
    %v408 = vpop.f32.mrf.mxu0
    %v409 = vadd.f32 0.0, %v408
    %v410 = vpop.f32.mrf.mxu0
    %v411 = vadd.f32 0.0, %v410
    %412 = vdwg.mxu0
    %v413 = vadd.f32 %v348, %v374
    %v414 = vadd.f32 %v349, %v376
    %v415 = vadd.f32 %v350, %v379
    %v416 = vadd.f32 %v351, %v381
    %v417 = vadd.f32 %v352, %v384
    %v418 = vadd.f32 %v353, %v386
    %v419 = vadd.f32 %v354, %v389
    %v420 = vadd.f32 %v355, %v391
    %v421 = vadd.f32 %v356, %v394
    %v422 = vadd.f32 %v357, %v396
    %v423 = vadd.f32 %v358, %v399
    %v424 = vadd.f32 %v359, %v401
    %v425 = vadd.f32 %v360, %v404
    %v426 = vadd.f32 %v361, %v406
    %v427 = vadd.f32 %v362, %v409
    %v428 = vadd.f32 %v363, %v411
    %429 = vst [vmem:[#allocation2] sm:$0xff] %v413
    %430 = vst [vmem:[#allocation2 + $0x8] sm:$0xff] %v414
    %431 = vst [vmem:[#allocation2 + $0x10] sm:$0xff] %v415
    %432 = vst [vmem:[#allocation2 + $0x18] sm:$0xff] %v416
    %433 = vst [vmem:[#allocation2 + $0x20] sm:$0xff] %v417
    %434 = vst [vmem:[#allocation2 + $0x28] sm:$0xff] %v418
    %435 = vst [vmem:[#allocation2 + $0x30] sm:$0xff] %v419
    %436 = vst [vmem:[#allocation2 + $0x38] sm:$0xff] %v420
    %437 = vst [vmem:[#allocation2 + $0x40] sm:$0xff] %v421
    %438 = vst [vmem:[#allocation2 + $0x48] sm:$0xff] %v422
    %439 = vst [vmem:[#allocation2 + $0x50] sm:$0xff] %v423
    %440 = vst [vmem:[#allocation2 + $0x58] sm:$0xff] %v424
    %441 = vst [vmem:[#allocation2 + $0x60] sm:$0xff] %v425
    %442 = vst [vmem:[#allocation2 + $0x68] sm:$0xff] %v426
    %443 = vst [vmem:[#allocation2 + $0x70] sm:$0xff] %v427
    %444 = vst [vmem:[#allocation2 + $0x78] sm:$0xff] %v428
    // Predicated region
    $region42: #{tpu_custom_call.1} parent=1 // pred_check
      %p445 = pneg %p33
    $region43: #{tpu_custom_call.1} parent=1 // pred_check_branch
      %447 = sbr.rel (%p445) target = $region45
    $region44: #{tpu_custom_call.1} parent=1 // pred_region
      %v448 = vld [vmem:[%s8] sm:$0xff]
      %v449 = vld [vmem:[#allocation2] sm:$0xff]
      %v450 = vld [vmem:[#allocation2 + $0x8] sm:$0xff]
      %v451 = vld [vmem:[#allocation2 + $0x10] sm:$0xff]
      %v452 = vld [vmem:[#allocation2 + $0x18] sm:$0xff]
      %v453 = vld [vmem:[#allocation2 + $0x20] sm:$0xff]
      %v454 = vld [vmem:[#allocation2 + $0x28] sm:$0xff]
      %v455 = vld [vmem:[#allocation2 + $0x30] sm:$0xff]
      %v456 = vld [vmem:[#allocation2 + $0x38] sm:$0xff]
      %v457 = vld [vmem:[#allocation2 + $0x40] sm:$0xff]
      %v458 = vld [vmem:[#allocation2 + $0x48] sm:$0xff]
      %v459 = vld [vmem:[#allocation2 + $0x50] sm:$0xff]
      %v460 = vld [vmem:[#allocation2 + $0x58] sm:$0xff]
      %v461 = vld [vmem:[#allocation2 + $0x60] sm:$0xff]
      %v462 = vld [vmem:[#allocation2 + $0x68] sm:$0xff]
      %v463 = vld [vmem:[#allocation2 + $0x70] sm:$0xff]
      %v464 = vld [vmem:[#allocation2 + $0x78] sm:$0xff]
      %v465 = vld [vmem:[%s3] sm:$0xff]
      %v466 = vld [vmem:[%s3 + $0x8] sm:$0xff]
      %v467 = vld [vmem:[%s3 + $0x10] sm:$0xff]
      %v468 = vld [vmem:[%s3 + $0x18] sm:$0xff]
      %v469 = vld [vmem:[%s3 + $0x20] sm:$0xff]
      %v470 = vld [vmem:[%s3 + $0x28] sm:$0xff]
      %v471 = vld [vmem:[%s3 + $0x30] sm:$0xff]
      %v472 = vld [vmem:[%s3 + $0x38] sm:$0xff]
      %v473 = vld [vmem:[%s3 + $0x40] sm:$0xff]
      %v474 = vld [vmem:[%s3 + $0x48] sm:$0xff]
      %v475 = vld [vmem:[%s3 + $0x50] sm:$0xff]
      %v476 = vld [vmem:[%s3 + $0x58] sm:$0xff]
      %v477 = vld [vmem:[%s3 + $0x60] sm:$0xff]
      %v478 = vld [vmem:[%s3 + $0x68] sm:$0xff]
      %v479 = vld [vmem:[%s3 + $0x70] sm:$0xff]
      %v480 = vld [vmem:[%s3 + $0x78] sm:$0xff]
      %482 = vset.pattern.permute.xlu0 0
      %483 = vperm.xlu0 %482, %v465
      %v484 = vpop.permute.xlu0 %483
      %487 = vset.pattern.permute.xlu0 0
      %488 = vperm.xlu0 %487, %v466
      %v489 = vpop.permute.xlu0 %488
      %492 = vset.pattern.permute.xlu0 0
      %493 = vperm.xlu0 %492, %v467
      %v494 = vpop.permute.xlu0 %493
      %497 = vset.pattern.permute.xlu0 0
      %498 = vperm.xlu0 %497, %v468
      %v499 = vpop.permute.xlu0 %498
      %502 = vset.pattern.permute.xlu0 0
      %503 = vperm.xlu0 %502, %v469
      %v504 = vpop.permute.xlu0 %503
      %507 = vset.pattern.permute.xlu0 0
      %508 = vperm.xlu0 %507, %v470
      %v509 = vpop.permute.xlu0 %508
      %512 = vset.pattern.permute.xlu0 0
      %513 = vperm.xlu0 %512, %v471
      %v514 = vpop.permute.xlu0 %513
      %517 = vset.pattern.permute.xlu0 0
      %518 = vperm.xlu0 %517, %v472
      %v519 = vpop.permute.xlu0 %518
      %522 = vset.pattern.permute.xlu0 0
      %523 = vperm.xlu0 %522, %v473
      %v524 = vpop.permute.xlu0 %523
      %527 = vset.pattern.permute.xlu0 0
      %528 = vperm.xlu0 %527, %v474
      %v529 = vpop.permute.xlu0 %528
      %532 = vset.pattern.permute.xlu0 0
      %533 = vperm.xlu0 %532, %v475
      %v534 = vpop.permute.xlu0 %533
      %537 = vset.pattern.permute.xlu0 0
      %538 = vperm.xlu0 %537, %v476
      %v539 = vpop.permute.xlu0 %538
      %542 = vset.pattern.permute.xlu0 0
      %543 = vperm.xlu0 %542, %v477
      %v544 = vpop.permute.xlu0 %543
      %547 = vset.pattern.permute.xlu0 0
      %548 = vperm.xlu0 %547, %v478
      %v549 = vpop.permute.xlu0 %548
      %552 = vset.pattern.permute.xlu0 0
      %553 = vperm.xlu0 %552, %v479
      %v554 = vpop.permute.xlu0 %553
      %557 = vset.pattern.permute.xlu0 0
      %558 = vperm.xlu0 %557, %v480
      %v559 = vpop.permute.xlu0 %558
      %v561 = vmul.f32 %v449, %v484
      %v562 = vmul.f32 %v450, %v489
      %v563 = vmul.f32 %v451, %v494
      %v564 = vmul.f32 %v452, %v499
      %v565 = vmul.f32 %v453, %v504
      %v566 = vmul.f32 %v454, %v509
      %v567 = vmul.f32 %v455, %v514
      %v568 = vmul.f32 %v456, %v519
      %v569 = vmul.f32 %v457, %v524
      %v570 = vmul.f32 %v458, %v529
      %v571 = vmul.f32 %v459, %v534
      %v572 = vmul.f32 %v460, %v539
      %v573 = vmul.f32 %v461, %v544
      %v574 = vmul.f32 %v462, %v549
      %v575 = vmul.f32 %v463, %v554
      %v576 = vmul.f32 %v464, %v559
      %v577 = vperm.slane %v448, 0
      %v578 = vadd.f32 %v561, %v577
      %v579 = vadd.f32 %v562, %v577
      %v580 = vadd.f32 %v563, %v577
      %v581 = vadd.f32 %v564, %v577
      %v582 = vadd.f32 %v565, %v577
      %v583 = vadd.f32 %v566, %v577
      %v584 = vadd.f32 %v567, %v577
      %v585 = vadd.f32 %v568, %v577
      %v586 = vadd.f32 %v569, %v577
      %v587 = vadd.f32 %v570, %v577
      %v588 = vadd.f32 %v571, %v577
      %v589 = vadd.f32 %v572, %v577
      %v590 = vadd.f32 %v573, %v577
      %v591 = vadd.f32 %v574, %v577
      %v592 = vadd.f32 %v575, %v577
      %v593 = vadd.f32 %v576, %v577
      %v594 = vtanh.pop %v578
      %v595 = vtanh.pop %v579
      %v596 = vtanh.pop %v580
      %v597 = vtanh.pop %v581
      %v598 = vtanh.pop %v582
      %v599 = vtanh.pop %v583
      %v600 = vtanh.pop %v584
      %v601 = vtanh.pop %v585
      %v602 = vtanh.pop %v586
      %v603 = vtanh.pop %v587
      %v604 = vtanh.pop %v588
      %v605 = vtanh.pop %v589
      %v606 = vtanh.pop %v590
      %v607 = vtanh.pop %v591
      %v608 = vtanh.pop %v592
      %v609 = vtanh.pop %v593
      %v610 = vpack.c.bf16 %v595, %v594
      %v611 = vpack.c.bf16 %v597, %v596
      %v612 = vpack.c.bf16 %v599, %v598
      %v613 = vpack.c.bf16 %v601, %v600
      %v614 = vpack.c.bf16 %v603, %v602
      %v615 = vpack.c.bf16 %v605, %v604
      %v616 = vpack.c.bf16 %v607, %v606
      %v617 = vpack.c.bf16 %v609, %v608
      %v618 = vld [vmem:[%s7] sm:$0xf]
      %v619 = vld [vmem:[%s7 + $0x4] sm:$0xf]
      %v620 = vld [vmem:[%s7 + $0x8] sm:$0xf]
      %v621 = vld [vmem:[%s7 + $0xc] sm:$0xf]
      %v622 = vld [vmem:[%s7 + $0x10] sm:$0xf]
      %v623 = vld [vmem:[%s7 + $0x14] sm:$0xf]
      %v624 = vld [vmem:[%s7 + $0x18] sm:$0xf]
      %v625 = vld [vmem:[%s7 + $0x1c] sm:$0xf]
      %v626 = vld [vmem:[%s7 + $0x20] sm:$0xf]
      %v627 = vld [vmem:[%s7 + $0x24] sm:$0xf]
      %v628 = vld [vmem:[%s7 + $0x28] sm:$0xf]
      %v629 = vld [vmem:[%s7 + $0x2c] sm:$0xf]
      %v630 = vld [vmem:[%s7 + $0x30] sm:$0xf]
      %v631 = vld [vmem:[%s7 + $0x34] sm:$0xf]
      %v632 = vld [vmem:[%s7 + $0x38] sm:$0xf]
      %v633 = vld [vmem:[%s7 + $0x3c] sm:$0xf]
      %v634 = vperm.slane %v448, 1
      %v651 = vunpack.c.l.b16 %v618
      %v652 = vunpack.c.l.b16 %v619
      %v653 = vunpack.c.l.b16 %v620
      %v654 = vunpack.c.l.b16 %v621
      %v655 = vunpack.c.l.b16 %v622
      %v656 = vunpack.c.l.b16 %v623
      %v657 = vunpack.c.l.b16 %v624
      %v658 = vunpack.c.l.b16 %v625
      %v659 = vunpack.c.l.b16 %v626
      %v660 = vunpack.c.l.b16 %v627
      %v661 = vunpack.c.l.b16 %v628
      %v662 = vunpack.c.l.b16 %v629
      %v663 = vunpack.c.l.b16 %v630
      %v664 = vunpack.c.l.b16 %v631
      %v665 = vunpack.c.l.b16 %v632
      %v666 = vunpack.c.l.b16 %v633
      %v667 = vpack.c.b16 %v652, %v651
      %v668 = vpack.c.b16 %v654, %v653
      %v669 = vpack.c.b16 %v656, %v655
      %v670 = vpack.c.b16 %v658, %v657
      %v671 = vpack.c.b16 %v660, %v659
      %v672 = vpack.c.b16 %v662, %v661
      %v673 = vpack.c.b16 %v664, %v663
      %v674 = vpack.c.b16 %v666, %v665
      %683 = vmatpush.bf16.msra.mxu0 %v674
      %684 = vmatpush.bf16.msra.mxu0 %v673
      %685 = vmatpush.bf16.msra.mxu0 %v672
      %686 = vmatpush.bf16.msra.mxu0 %v671
      %687 = vmatpush.bf16.msra.mxu0 %v670
      %688 = vmatpush.bf16.msra.mxu0 %v669
      %689 = vmatpush.bf16.msra.mxu0 %v668
      %690 = vmatpush.bf16.msra.mxu0 %v667
      %691 = vmatmul.bf16.gmra.mxu0 %v610
      %v692 = vpop.f32.mrf.mxu0
      %v693 = vadd.f32 %v634, %v692
      %v694 = vpop.f32.mrf.mxu0
      %v695 = vadd.f32 %v634, %v694
      %696 = vmatmul.bf16.gmra.mxu0 %v611
      %v697 = vpop.f32.mrf.mxu0
      %v698 = vadd.f32 %v634, %v697
      %v699 = vpop.f32.mrf.mxu0
      %v700 = vadd.f32 %v634, %v699
      %701 = vmatmul.bf16.gmra.mxu0 %v612
      %v702 = vpop.f32.mrf.mxu0
      %v703 = vadd.f32 %v634, %v702
      %v704 = vpop.f32.mrf.mxu0
      %v705 = vadd.f32 %v634, %v704
      %706 = vmatmul.bf16.gmra.mxu0 %v613
      %v707 = vpop.f32.mrf.mxu0
      %v708 = vadd.f32 %v634, %v707
      %v709 = vpop.f32.mrf.mxu0
      %v710 = vadd.f32 %v634, %v709
      %711 = vmatmul.bf16.gmra.mxu0 %v614
      %v712 = vpop.f32.mrf.mxu0
      %v713 = vadd.f32 %v634, %v712
      %v714 = vpop.f32.mrf.mxu0
      %v715 = vadd.f32 %v634, %v714
      %716 = vmatmul.bf16.gmra.mxu0 %v615
      %v717 = vpop.f32.mrf.mxu0
      %v718 = vadd.f32 %v634, %v717
      %v719 = vpop.f32.mrf.mxu0
      %v720 = vadd.f32 %v634, %v719
      %721 = vmatmul.bf16.gmra.mxu0 %v616
      %v722 = vpop.f32.mrf.mxu0
      %v723 = vadd.f32 %v634, %v722
      %v724 = vpop.f32.mrf.mxu0
      %v725 = vadd.f32 %v634, %v724
      %726 = vmatmul.bf16.gmra.mxu0 %v617
      %v727 = vpop.f32.mrf.mxu0
      %v728 = vadd.f32 %v634, %v727
      %v729 = vpop.f32.mrf.mxu0
      %v730 = vadd.f32 %v634, %v729
      %731 = vdwg.mxu0
      %v732 = vxor.u32 %v693, 2147483648
      %v733 = vxor.u32 %v695, 2147483648
      %v734 = vxor.u32 %v698, 2147483648
      %v735 = vxor.u32 %v700, 2147483648
      %v736 = vxor.u32 %v703, 2147483648
      %v737 = vxor.u32 %v705, 2147483648
      %v738 = vxor.u32 %v708, 2147483648
      %v739 = vxor.u32 %v710, 2147483648
      %v740 = vxor.u32 %v713, 2147483648
      %v741 = vxor.u32 %v715, 2147483648
      %v742 = vxor.u32 %v718, 2147483648
      %v743 = vxor.u32 %v720, 2147483648
      %v744 = vxor.u32 %v723, 2147483648
      %v745 = vxor.u32 %v725, 2147483648
      %v746 = vxor.u32 %v728, 2147483648
      %v747 = vxor.u32 %v730, 2147483648
      %v748 = vmul.f32 %v732, 1.442695
      %v749 = vpow.pop %v748
      %v750 = vmul.f32 %v733, 1.442695
      %v751 = vpow.pop %v750
      %v752 = vmul.f32 %v734, 1.442695
      %v753 = vpow.pop %v752
      %v754 = vmul.f32 %v735, 1.442695
      %v755 = vpow.pop %v754
      %v756 = vmul.f32 %v736, 1.442695
      %v757 = vpow.pop %v756
      %v758 = vmul.f32 %v737, 1.442695
      %v759 = vpow.pop %v758
      %v760 = vmul.f32 %v738, 1.442695
      %v761 = vpow.pop %v760
      %v762 = vmul.f32 %v739, 1.442695
      %v763 = vpow.pop %v762
      %v764 = vmul.f32 %v740, 1.442695
      %v765 = vpow.pop %v764
      %v766 = vmul.f32 %v741, 1.442695
      %v767 = vpow.pop %v766
      %v768 = vmul.f32 %v742, 1.442695
      %v769 = vpow.pop %v768
      %v770 = vmul.f32 %v743, 1.442695
      %v771 = vpow.pop %v770
      %v772 = vmul.f32 %v744, 1.442695
      %v773 = vpow.pop %v772
      %v774 = vmul.f32 %v745, 1.442695
      %v775 = vpow.pop %v774
      %v776 = vmul.f32 %v746, 1.442695
      %v777 = vpow.pop %v776
      %v778 = vmul.f32 %v747, 1.442695
      %v779 = vpow.pop %v778
      %v780 = vadd.f32 %v749, 1.0
      %v781 = vadd.f32 %v751, 1.0
      %v782 = vadd.f32 %v753, 1.0
      %v783 = vadd.f32 %v755, 1.0
      %v784 = vadd.f32 %v757, 1.0
      %v785 = vadd.f32 %v759, 1.0
      %v786 = vadd.f32 %v761, 1.0
      %v787 = vadd.f32 %v763, 1.0
      %v788 = vadd.f32 %v765, 1.0
      %v789 = vadd.f32 %v767, 1.0
      %v790 = vadd.f32 %v769, 1.0
      %v791 = vadd.f32 %v771, 1.0
      %v792 = vadd.f32 %v773, 1.0
      %v793 = vadd.f32 %v775, 1.0
      %v794 = vadd.f32 %v777, 1.0
      %v795 = vadd.f32 %v779, 1.0
      %v796 = vrcp.pop %v780
      %v797 = vmul.f32 %v780, %v796
      %v798 = vsub.f32 1.0, %v797
      %v799 = vmul.f32 %v796, %v798
      %v800 = vadd.f32 %v796, %v799
      %vm801 = vweird.f32 %v780
      %vm802 = vweird.f32 %v796
      %vm803 = vmor %vm801, %vm802
      %v804 = vsel %vm803, %v796, %v800
      %v805 = vand.u32 2147483647, %v780
      %vm806 = vcmp.eq.f32.partialorder %v805, 8.507059e+37
      %v807 = vand.u32 %v780, 2147483648
      %v808 = vor.u32 1.1754944e-38, %v807
      %v809 = vsel %vm806, %v808, %v804
      %v810 = vmul.f32 1.0, %v809
      %v811 = vrcp.pop %v781
      %v812 = vmul.f32 %v781, %v811
      %v813 = vsub.f32 1.0, %v812
      %v814 = vmul.f32 %v811, %v813
      %v815 = vadd.f32 %v811, %v814
      %vm816 = vweird.f32 %v781
      %vm817 = vweird.f32 %v811
      %vm818 = vmor %vm816, %vm817
      %v819 = vsel %vm818, %v811, %v815
      %v820 = vand.u32 2147483647, %v781
      %vm821 = vcmp.eq.f32.partialorder %v820, 8.507059e+37
      %v822 = vand.u32 %v781, 2147483648
      %v823 = vor.u32 1.1754944e-38, %v822
      %v824 = vsel %vm821, %v823, %v819
      %v825 = vmul.f32 1.0, %v824
      %v826 = vrcp.pop %v782
      %v827 = vmul.f32 %v782, %v826
      %v828 = vsub.f32 1.0, %v827
      %v829 = vmul.f32 %v826, %v828
      %v830 = vadd.f32 %v826, %v829
      %vm831 = vweird.f32 %v782
      %vm832 = vweird.f32 %v826
      %vm833 = vmor %vm831, %vm832
      %v834 = vsel %vm833, %v826, %v830
      %v835 = vand.u32 2147483647, %v782
      %vm836 = vcmp.eq.f32.partialorder %v835, 8.507059e+37
      %v837 = vand.u32 %v782, 2147483648
      %v838 = vor.u32 1.1754944e-38, %v837
      %v839 = vsel %vm836, %v838, %v834
      %v840 = vmul.f32 1.0, %v839
      %v841 = vrcp.pop %v783
      %v842 = vmul.f32 %v783, %v841
      %v843 = vsub.f32 1.0, %v842
      %v844 = vmul.f32 %v841, %v843
      %v845 = vadd.f32 %v841, %v844
      %vm846 = vweird.f32 %v783
      %vm847 = vweird.f32 %v841
      %vm848 = vmor %vm846, %vm847
      %v849 = vsel %vm848, %v841, %v845
      %v850 = vand.u32 2147483647, %v783
      %vm851 = vcmp.eq.f32.partialorder %v850, 8.507059e+37
      %v852 = vand.u32 %v783, 2147483648
      %v853 = vor.u32 1.1754944e-38, %v852
      %v854 = vsel %vm851, %v853, %v849
      %v855 = vmul.f32 1.0, %v854
      %v856 = vrcp.pop %v784
      %v857 = vmul.f32 %v784, %v856
      %v858 = vsub.f32 1.0, %v857
      %v859 = vmul.f32 %v856, %v858
      %v860 = vadd.f32 %v856, %v859
      %vm861 = vweird.f32 %v784
      %vm862 = vweird.f32 %v856
      %vm863 = vmor %vm861, %vm862
      %v864 = vsel %vm863, %v856, %v860
      %v865 = vand.u32 2147483647, %v784
      %vm866 = vcmp.eq.f32.partialorder %v865, 8.507059e+37
      %v867 = vand.u32 %v784, 2147483648
      %v868 = vor.u32 1.1754944e-38, %v867
      %v869 = vsel %vm866, %v868, %v864
      %v870 = vmul.f32 1.0, %v869
      %v871 = vrcp.pop %v785
      %v872 = vmul.f32 %v785, %v871
      %v873 = vsub.f32 1.0, %v872
      %v874 = vmul.f32 %v871, %v873
      %v875 = vadd.f32 %v871, %v874
      %vm876 = vweird.f32 %v785
      %vm877 = vweird.f32 %v871
      %vm878 = vmor %vm876, %vm877
      %v879 = vsel %vm878, %v871, %v875
      %v880 = vand.u32 2147483647, %v785
      %vm881 = vcmp.eq.f32.partialorder %v880, 8.507059e+37
      %v882 = vand.u32 %v785, 2147483648
      %v883 = vor.u32 1.1754944e-38, %v882
      %v884 = vsel %vm881, %v883, %v879
      %v885 = vmul.f32 1.0, %v884
      %v886 = vrcp.pop %v786
      %v887 = vmul.f32 %v786, %v886
      %v888 = vsub.f32 1.0, %v887
      %v889 = vmul.f32 %v886, %v888
      %v890 = vadd.f32 %v886, %v889
      %vm891 = vweird.f32 %v786
      %vm892 = vweird.f32 %v886
      %vm893 = vmor %vm891, %vm892
      %v894 = vsel %vm893, %v886, %v890
      %v895 = vand.u32 2147483647, %v786
      %vm896 = vcmp.eq.f32.partialorder %v895, 8.507059e+37
      %v897 = vand.u32 %v786, 2147483648
      %v898 = vor.u32 1.1754944e-38, %v897
      %v899 = vsel %vm896, %v898, %v894
      %v900 = vmul.f32 1.0, %v899
      %v901 = vrcp.pop %v787
      %v902 = vmul.f32 %v787, %v901
      %v903 = vsub.f32 1.0, %v902
      %v904 = vmul.f32 %v901, %v903
      %v905 = vadd.f32 %v901, %v904
      %vm906 = vweird.f32 %v787
      %vm907 = vweird.f32 %v901
      %vm908 = vmor %vm906, %vm907
      %v909 = vsel %vm908, %v901, %v905
      %v910 = vand.u32 2147483647, %v787
      %vm911 = vcmp.eq.f32.partialorder %v910, 8.507059e+37
      %v912 = vand.u32 %v787, 2147483648
      %v913 = vor.u32 1.1754944e-38, %v912
      %v914 = vsel %vm911, %v913, %v909
      %v915 = vmul.f32 1.0, %v914
      %v916 = vrcp.pop %v788
      %v917 = vmul.f32 %v788, %v916
      %v918 = vsub.f32 1.0, %v917
      %v919 = vmul.f32 %v916, %v918
      %v920 = vadd.f32 %v916, %v919
      %vm921 = vweird.f32 %v788
      %vm922 = vweird.f32 %v916
      %vm923 = vmor %vm921, %vm922
      %v924 = vsel %vm923, %v916, %v920
      %v925 = vand.u32 2147483647, %v788
      %vm926 = vcmp.eq.f32.partialorder %v925, 8.507059e+37
      %v927 = vand.u32 %v788, 2147483648
      %v928 = vor.u32 1.1754944e-38, %v927
      %v929 = vsel %vm926, %v928, %v924
      %v930 = vmul.f32 1.0, %v929
      %v931 = vrcp.pop %v789
      %v932 = vmul.f32 %v789, %v931
      %v933 = vsub.f32 1.0, %v932
      %v934 = vmul.f32 %v931, %v933
      %v935 = vadd.f32 %v931, %v934
      %vm936 = vweird.f32 %v789
      %vm937 = vweird.f32 %v931
      %vm938 = vmor %vm936, %vm937
      %v939 = vsel %vm938, %v931, %v935
      %v940 = vand.u32 2147483647, %v789
      %vm941 = vcmp.eq.f32.partialorder %v940, 8.507059e+37
      %v942 = vand.u32 %v789, 2147483648
      %v943 = vor.u32 1.1754944e-38, %v942
      %v944 = vsel %vm941, %v943, %v939
      %v945 = vmul.f32 1.0, %v944
      %v946 = vrcp.pop %v790
      %v947 = vmul.f32 %v790, %v946
      %v948 = vsub.f32 1.0, %v947
      %v949 = vmul.f32 %v946, %v948
      %v950 = vadd.f32 %v946, %v949
      %vm951 = vweird.f32 %v790
      %vm952 = vweird.f32 %v946
      %vm953 = vmor %vm951, %vm952
      %v954 = vsel %vm953, %v946, %v950
      %v955 = vand.u32 2147483647, %v790
      %vm956 = vcmp.eq.f32.partialorder %v955, 8.507059e+37
      %v957 = vand.u32 %v790, 2147483648
      %v958 = vor.u32 1.1754944e-38, %v957
      %v959 = vsel %vm956, %v958, %v954
      %v960 = vmul.f32 1.0, %v959
      %v961 = vrcp.pop %v791
      %v962 = vmul.f32 %v791, %v961
      %v963 = vsub.f32 1.0, %v962
      %v964 = vmul.f32 %v961, %v963
      %v965 = vadd.f32 %v961, %v964
      %vm966 = vweird.f32 %v791
      %vm967 = vweird.f32 %v961
      %vm968 = vmor %vm966, %vm967
      %v969 = vsel %vm968, %v961, %v965
      %v970 = vand.u32 2147483647, %v791
      %vm971 = vcmp.eq.f32.partialorder %v970, 8.507059e+37
      %v972 = vand.u32 %v791, 2147483648
      %v973 = vor.u32 1.1754944e-38, %v972
      %v974 = vsel %vm971, %v973, %v969
      %v975 = vmul.f32 1.0, %v974
      %v976 = vrcp.pop %v792
      %v977 = vmul.f32 %v792, %v976
      %v978 = vsub.f32 1.0, %v977
      %v979 = vmul.f32 %v976, %v978
      %v980 = vadd.f32 %v976, %v979
      %vm981 = vweird.f32 %v792
      %vm982 = vweird.f32 %v976
      %vm983 = vmor %vm981, %vm982
      %v984 = vsel %vm983, %v976, %v980
      %v985 = vand.u32 2147483647, %v792
      %vm986 = vcmp.eq.f32.partialorder %v985, 8.507059e+37
      %v987 = vand.u32 %v792, 2147483648
      %v988 = vor.u32 1.1754944e-38, %v987
      %v989 = vsel %vm986, %v988, %v984
      %v990 = vmul.f32 1.0, %v989
      %v991 = vrcp.pop %v793
      %v992 = vmul.f32 %v793, %v991
      %v993 = vsub.f32 1.0, %v992
      %v994 = vmul.f32 %v991, %v993
      %v995 = vadd.f32 %v991, %v994
      %vm996 = vweird.f32 %v793
      %vm997 = vweird.f32 %v991
      %vm998 = vmor %vm996, %vm997
      %v999 = vsel %vm998, %v991, %v995
      %v1000 = vand.u32 2147483647, %v793
      %vm1001 = vcmp.eq.f32.partialorder %v1000, 8.507059e+37
      %v1002 = vand.u32 %v793, 2147483648
      %v1003 = vor.u32 1.1754944e-38, %v1002
      %v1004 = vsel %vm1001, %v1003, %v999
      %v1005 = vmul.f32 1.0, %v1004
      %v1006 = vrcp.pop %v794
      %v1007 = vmul.f32 %v794, %v1006
      %v1008 = vsub.f32 1.0, %v1007
      %v1009 = vmul.f32 %v1006, %v1008
      %v1010 = vadd.f32 %v1006, %v1009
      %vm1011 = vweird.f32 %v794
      %vm1012 = vweird.f32 %v1006
      %vm1013 = vmor %vm1011, %vm1012
      %v1014 = vsel %vm1013, %v1006, %v1010
      %v1015 = vand.u32 2147483647, %v794
      %vm1016 = vcmp.eq.f32.partialorder %v1015, 8.507059e+37
      %v1017 = vand.u32 %v794, 2147483648
      %v1018 = vor.u32 1.1754944e-38, %v1017
      %v1019 = vsel %vm1016, %v1018, %v1014
      %v1020 = vmul.f32 1.0, %v1019
      %v1021 = vrcp.pop %v795
      %v1022 = vmul.f32 %v795, %v1021
      %v1023 = vsub.f32 1.0, %v1022
      %v1024 = vmul.f32 %v1021, %v1023
      %v1025 = vadd.f32 %v1021, %v1024
      %vm1026 = vweird.f32 %v795
      %vm1027 = vweird.f32 %v1021
      %vm1028 = vmor %vm1026, %vm1027
      %v1029 = vsel %vm1028, %v1021, %v1025
      %v1030 = vand.u32 2147483647, %v795
      %vm1031 = vcmp.eq.f32.partialorder %v1030, 8.507059e+37
      %v1032 = vand.u32 %v795, 2147483648
      %v1033 = vor.u32 1.1754944e-38, %v1032
      %v1034 = vsel %vm1031, %v1033, %v1029
      %v1035 = vmul.f32 1.0, %v1034
      %v1036 = vld [vmem:[%s0] sm:$0xff]
      %v1037 = vld [vmem:[%s0 + $0x8] sm:$0xff]
      %v1038 = vld [vmem:[%s0 + $0x10] sm:$0xff]
      %v1039 = vld [vmem:[%s0 + $0x18] sm:$0xff]
      %v1040 = vld [vmem:[%s0 + $0x20] sm:$0xff]
      %v1041 = vld [vmem:[%s0 + $0x28] sm:$0xff]
      %v1042 = vld [vmem:[%s0 + $0x30] sm:$0xff]
      %v1043 = vld [vmem:[%s0 + $0x38] sm:$0xff]
      %v1044 = vld [vmem:[%s0 + $0x40] sm:$0xff]
      %v1045 = vld [vmem:[%s0 + $0x48] sm:$0xff]
      %v1046 = vld [vmem:[%s0 + $0x50] sm:$0xff]
      %v1047 = vld [vmem:[%s0 + $0x58] sm:$0xff]
      %v1048 = vld [vmem:[%s0 + $0x60] sm:$0xff]
      %v1049 = vld [vmem:[%s0 + $0x68] sm:$0xff]
      %v1050 = vld [vmem:[%s0 + $0x70] sm:$0xff]
      %v1051 = vld [vmem:[%s0 + $0x78] sm:$0xff]
      %v1052 = vld [vmem:[%s6] sm:$0xff]
      %v1053 = vperm.slane %v448, 2
      %v1055 = vsel %vm70, %v1036, 0
      %v1058 = vsel %vm70, %v1037, 0
      %v1061 = vsel %vm70, %v1038, 0
      %v1064 = vsel %vm70, %v1039, 0
      %v1067 = vsel %vm70, %v1040, 0
      %v1070 = vsel %vm70, %v1041, 0
      %v1073 = vsel %vm70, %v1042, 0
      %v1076 = vsel %vm70, %v1043, 0
      %v1079 = vsel %vm70, %v1044, 0
      %v1082 = vsel %vm70, %v1045, 0
      %v1085 = vsel %vm70, %v1046, 0
      %v1088 = vsel %vm70, %v1047, 0
      %v1091 = vsel %vm70, %v1048, 0
      %v1094 = vsel %vm70, %v1049, 0
      %v1097 = vsel %vm70, %v1050, 0
      %v1100 = vsel %vm70, %v1051, 0
      %1102 = vmatpush.msra.mxu0 0.0
      %1103 = vmatpush.msra.mxu0 0.0
      %1104 = vmatpush.msra.mxu0 0.0
      %1105 = vmatpush.msra.mxu0 0.0
      %1106 = vmatpush.msra.mxu0 0.0
      %1107 = vmatpush.msra.mxu0 0.0
      %1108 = vmatpush.msra.mxu0 0.0
      %1109 = vmatpush.msra.mxu0 0.0
      %1110 = vmatpush.msra.mxu0 0.0
      %1111 = vmatpush.msra.mxu0 0.0
      %1112 = vmatpush.msra.mxu0 0.0
      %1113 = vmatpush.msra.mxu0 0.0
      %1114 = vmatpush.msra.mxu0 0.0
      %1115 = vmatpush.msra.mxu0 0.0
      %1116 = vmatpush.msra.mxu0 0.0
      %1117 = vmatpush.msra.mxu0 %v1052
      %1118 = vmatmul.f32.gmra.mxu0 %v1055
      %v1119 = vpop.f32.mrf.mxu0
      %v1120 = vadd.f32 %v1053, %v1119
      %1121 = vmatmul.f32.gmra.mxu0 %v1058
      %v1122 = vpop.f32.mrf.mxu0
      %v1123 = vadd.f32 %v1053, %v1122
      %1124 = vmatmul.f32.gmra.mxu0 %v1061
      %v1125 = vpop.f32.mrf.mxu0
      %v1126 = vadd.f32 %v1053, %v1125
      %1127 = vmatmul.f32.gmra.mxu0 %v1064
      %v1128 = vpop.f32.mrf.mxu0
      %v1129 = vadd.f32 %v1053, %v1128
      %1130 = vmatmul.f32.gmra.mxu0 %v1067
      %v1131 = vpop.f32.mrf.mxu0
      %v1132 = vadd.f32 %v1053, %v1131
      %1133 = vmatmul.f32.gmra.mxu0 %v1070
      %v1134 = vpop.f32.mrf.mxu0
      %v1135 = vadd.f32 %v1053, %v1134
      %1136 = vmatmul.f32.gmra.mxu0 %v1073
      %v1137 = vpop.f32.mrf.mxu0
      %v1138 = vadd.f32 %v1053, %v1137
      %1139 = vmatmul.f32.gmra.mxu0 %v1076
      %v1140 = vpop.f32.mrf.mxu0
      %v1141 = vadd.f32 %v1053, %v1140
      %1142 = vmatmul.f32.gmra.mxu0 %v1079
      %v1143 = vpop.f32.mrf.mxu0
      %v1144 = vadd.f32 %v1053, %v1143
      %1145 = vmatmul.f32.gmra.mxu0 %v1082
      %v1146 = vpop.f32.mrf.mxu0
      %v1147 = vadd.f32 %v1053, %v1146
      %1148 = vmatmul.f32.gmra.mxu0 %v1085
      %v1149 = vpop.f32.mrf.mxu0
      %v1150 = vadd.f32 %v1053, %v1149
      %1151 = vmatmul.f32.gmra.mxu0 %v1088
      %v1152 = vpop.f32.mrf.mxu0
      %v1153 = vadd.f32 %v1053, %v1152
      %1154 = vmatmul.f32.gmra.mxu0 %v1091
      %v1155 = vpop.f32.mrf.mxu0
      %v1156 = vadd.f32 %v1053, %v1155
      %1157 = vmatmul.f32.gmra.mxu0 %v1094
      %v1158 = vpop.f32.mrf.mxu0
      %v1159 = vadd.f32 %v1053, %v1158
      %1160 = vmatmul.f32.gmra.mxu0 %v1097
      %v1161 = vpop.f32.mrf.mxu0
      %v1162 = vadd.f32 %v1053, %v1161
      %1163 = vmatmul.f32.gmra.mxu0 %v1100
      %v1164 = vpop.f32.mrf.mxu0
      %v1165 = vadd.f32 %v1053, %v1164
      %1166 = vdwg.mxu0
      %v1167 = vsub.f32 1.0, %v810
      %v1168 = vsub.f32 1.0, %v825
      %v1169 = vsub.f32 1.0, %v840
      %v1170 = vsub.f32 1.0, %v855
      %v1171 = vsub.f32 1.0, %v870
      %v1172 = vsub.f32 1.0, %v885
      %v1173 = vsub.f32 1.0, %v900
      %v1174 = vsub.f32 1.0, %v915
      %v1175 = vsub.f32 1.0, %v930
      %v1176 = vsub.f32 1.0, %v945
      %v1177 = vsub.f32 1.0, %v960
      %v1178 = vsub.f32 1.0, %v975
      %v1179 = vsub.f32 1.0, %v990
      %v1180 = vsub.f32 1.0, %v1005
      %v1181 = vsub.f32 1.0, %v1020
      %v1182 = vsub.f32 1.0, %v1035
      %v1183 = vmul.f32 %v1167, %v1120
      %v1184 = vmul.f32 %v1168, %v1123
      %v1185 = vmul.f32 %v1169, %v1126
      %v1186 = vmul.f32 %v1170, %v1129
      %v1187 = vmul.f32 %v1171, %v1132
      %v1188 = vmul.f32 %v1172, %v1135
      %v1189 = vmul.f32 %v1173, %v1138
      %v1190 = vmul.f32 %v1174, %v1141
      %v1191 = vmul.f32 %v1175, %v1144
      %v1192 = vmul.f32 %v1176, %v1147
      %v1193 = vmul.f32 %v1177, %v1150
      %v1194 = vmul.f32 %v1178, %v1153
      %v1195 = vmul.f32 %v1179, %v1156
      %v1196 = vmul.f32 %v1180, %v1159
      %v1197 = vmul.f32 %v1181, %v1162
      %v1198 = vmul.f32 %v1182, %v1165
      %v1199 = vmul.f32 %v810, %v594
      %v1200 = vmul.f32 %v825, %v595
      %v1201 = vmul.f32 %v840, %v596
      %v1202 = vmul.f32 %v855, %v597
      %v1203 = vmul.f32 %v870, %v598
      %v1204 = vmul.f32 %v885, %v599
      %v1205 = vmul.f32 %v900, %v600
      %v1206 = vmul.f32 %v915, %v601
      %v1207 = vmul.f32 %v930, %v602
      %v1208 = vmul.f32 %v945, %v603
      %v1209 = vmul.f32 %v960, %v604
      %v1210 = vmul.f32 %v975, %v605
      %v1211 = vmul.f32 %v990, %v606
      %v1212 = vmul.f32 %v1005, %v607
      %v1213 = vmul.f32 %v1020, %v608
      %v1214 = vmul.f32 %v1035, %v609
      %v1215 = vadd.f32 %v1183, %v1199
      %v1216 = vadd.f32 %v1184, %v1200
      %v1217 = vadd.f32 %v1185, %v1201
      %v1218 = vadd.f32 %v1186, %v1202
      %v1219 = vadd.f32 %v1187, %v1203
      %v1220 = vadd.f32 %v1188, %v1204
      %v1221 = vadd.f32 %v1189, %v1205
      %v1222 = vadd.f32 %v1190, %v1206
      %v1223 = vadd.f32 %v1191, %v1207
      %v1224 = vadd.f32 %v1192, %v1208
      %v1225 = vadd.f32 %v1193, %v1209
      %v1226 = vadd.f32 %v1194, %v1210
      %v1227 = vadd.f32 %v1195, %v1211
      %v1228 = vadd.f32 %v1196, %v1212
      %v1229 = vadd.f32 %v1197, %v1213
      %v1230 = vadd.f32 %v1198, %v1214
      %v1231 = vmax.f32 %v1215, 0.0
      %v1232 = vmax.f32 %v1216, 0.0
      %v1233 = vmax.f32 %v1217, 0.0
      %v1234 = vmax.f32 %v1218, 0.0
      %v1235 = vmax.f32 %v1219, 0.0
      %v1236 = vmax.f32 %v1220, 0.0
      %v1237 = vmax.f32 %v1221, 0.0
      %v1238 = vmax.f32 %v1222, 0.0
      %v1239 = vmax.f32 %v1223, 0.0
      %v1240 = vmax.f32 %v1224, 0.0
      %v1241 = vmax.f32 %v1225, 0.0
      %v1242 = vmax.f32 %v1226, 0.0
      %v1243 = vmax.f32 %v1227, 0.0
      %v1244 = vmax.f32 %v1228, 0.0
      %v1245 = vmax.f32 %v1229, 0.0
      %v1246 = vmax.f32 %v1230, 0.0
      %v1247 = vperm.slane %v448, 3
      %v1248 = vmul.f32 %v1231, %v1247
      %v1249 = vmul.f32 %v1232, %v1247
      %v1250 = vmul.f32 %v1233, %v1247
      %v1251 = vmul.f32 %v1234, %v1247
      %v1252 = vmul.f32 %v1235, %v1247
      %v1253 = vmul.f32 %v1236, %v1247
      %v1254 = vmul.f32 %v1237, %v1247
      %v1255 = vmul.f32 %v1238, %v1247
      %v1256 = vmul.f32 %v1239, %v1247
      %v1257 = vmul.f32 %v1240, %v1247
      %v1258 = vmul.f32 %v1241, %v1247
      %v1259 = vmul.f32 %v1242, %v1247
      %v1260 = vmul.f32 %v1243, %v1247
      %v1261 = vmul.f32 %v1244, %v1247
      %v1262 = vmul.f32 %v1245, %v1247
      %v1263 = vmul.f32 %v1246, %v1247
      %v1264 = vperm.slane %v448, 4
      %v1265 = vadd.f32 %v1248, %v1264
      %v1266 = vadd.f32 %v1249, %v1264
      %v1267 = vadd.f32 %v1250, %v1264
      %v1268 = vadd.f32 %v1251, %v1264
      %v1269 = vadd.f32 %v1252, %v1264
      %v1270 = vadd.f32 %v1253, %v1264
      %v1271 = vadd.f32 %v1254, %v1264
      %v1272 = vadd.f32 %v1255, %v1264
      %v1273 = vadd.f32 %v1256, %v1264
      %v1274 = vadd.f32 %v1257, %v1264
      %v1275 = vadd.f32 %v1258, %v1264
      %v1276 = vadd.f32 %v1259, %v1264
      %v1277 = vadd.f32 %v1260, %v1264
      %v1278 = vadd.f32 %v1261, %v1264
      %v1279 = vadd.f32 %v1262, %v1264
      %v1280 = vadd.f32 %v1263, %v1264
      %1281 = vst [vmem:[#allocation3] sm:$0xff] %v1265
      %1282 = vst [vmem:[#allocation3 + $0x8] sm:$0xff] %v1266
      %1283 = vst [vmem:[#allocation3 + $0x10] sm:$0xff] %v1267
      %1284 = vst [vmem:[#allocation3 + $0x18] sm:$0xff] %v1268
      %1285 = vst [vmem:[#allocation3 + $0x20] sm:$0xff] %v1269
      %1286 = vst [vmem:[#allocation3 + $0x28] sm:$0xff] %v1270
      %1287 = vst [vmem:[#allocation3 + $0x30] sm:$0xff] %v1271
      %1288 = vst [vmem:[#allocation3 + $0x38] sm:$0xff] %v1272
      %1289 = vst [vmem:[#allocation3 + $0x40] sm:$0xff] %v1273
      %1290 = vst [vmem:[#allocation3 + $0x48] sm:$0xff] %v1274
      %1291 = vst [vmem:[#allocation3 + $0x50] sm:$0xff] %v1275
      %1292 = vst [vmem:[#allocation3 + $0x58] sm:$0xff] %v1276
      %1293 = vst [vmem:[#allocation3 + $0x60] sm:$0xff] %v1277
      %1294 = vst [vmem:[#allocation3 + $0x68] sm:$0xff] %v1278
      %1295 = vst [vmem:[#allocation3 + $0x70] sm:$0xff] %v1279
      %1296 = vst [vmem:[#allocation3 + $0x78] sm:$0xff] %v1280
    $region45: #{tpu_custom_call.1} parent=1 // pred_fallthru
      _
    // Predicated region
    $region46: #{tpu_custom_call.1} parent=1 // pred_check
      _
    $region47: #{tpu_custom_call.1} parent=1 // pred_check_branch
      %1298 = sbr.rel (0) target = $region49
    $region48: #{tpu_custom_call.1} parent=1 // pred_region
      %1300 = vsyncadd [#allocation4], 0
      %s1301 = sshll.u32 [#allocation3], 4
      %s1302 = int_to_ptr.vmem [resolvable:$true] %s1301
      %s1303 = sshll.u32 %s9, 4
      %s1304 = int_to_ptr.hbm [resolvable:$true] %s1303
      %1309 = dma.vmem_to_hbm [thread:$0]  %s1302, 2048, %s1304, [#allocation4], 128, 128, 8
    $region49: #{tpu_custom_call.1} parent=1 // pred_fallthru
      _
    // Predicated region
    $region50: #{tpu_custom_call.1} parent=1 // pred_check
      _
    $region51: #{tpu_custom_call.1} parent=1 // pred_check_branch
      %1311 = sbr.rel (0) target = $region53
    $region52: #{tpu_custom_call.1} parent=1 // pred_region
      %1313 = dma.done [#allocation4], 2048
    $region53: #{tpu_custom_call.1} parent=1 // pred_fallthru
      _
    %1314 = vsyncpa [#allocation4], 1

</llo_original>
